<compile_context>
chip_gen: v7x
topology: tpu7x:2x2x1
jax: 0.10.0
libtpu: 0.0.40
codegen_flags: <defaults>
</compile_context>

<pallas_src>
import functools

import jax
import jax.numpy as jnp
from jax.experimental import pallas as pl
from jax.experimental.pallas import tpu as pltpu


def _round_up(a: int, b: int) -> int:
    return (a + b - 1) // b * b


def _swish(z):
    # swish(z) = z * sigmoid(z) == 0.5 * z * (1 + tanh(z / 2))  (exact identity,
    # one EUP transcendental per element instead of exp + exact divide).
    return 0.5 * z * (1.0 + jnp.tanh(0.5 * z))


def residual_layer_kernel(x_ref, w1_ref, b1_ref, w2_ref, b2_ref, o_ref):
    # NOTE: rows are independent.  The trailing partial row-block may contain
    # undefined rows (grid uses cdiv, no row padding); their results are
    # write-masked by Pallas.  Do not add cross-row reductions here without
    # restoring row padding.
    # lin1 + act: feed the MXU in the weight dtype, accumulate f32.
    h = jnp.dot(x_ref[...].astype(w1_ref.dtype), w1_ref[...],
                preferred_element_type=jnp.float32)
    h = _swish(h + b1_ref[...])                       # f32 elementwise (v5e-safe)
    # lin2 + act
    h2 = jnp.dot(h.astype(w2_ref.dtype), w2_ref[...],
                 preferred_element_type=jnp.float32)
    h2 = _swish(h2 + b2_ref[...])
    # Residual: re-read x from the already-resident VMEM tile (short live range).
    o_ref[...] = (x_ref[...].astype(jnp.float32) + h2).astype(o_ref.dtype)


@functools.partial(jax.jit, static_argnames=("tm", "compute_dtype"))
def residual_layer(x, w1, b1, w2, b2, *, tm=512, compute_dtype=jnp.bfloat16):
    """x: (N, H).  w1/w2: (H, H) stored as (in, out) = W.T of torch layout.  b: (H,)."""
    N, H = x.shape

    # Row tile: multiple of 8 sublanes, clamped for small N.  When N is large
    # enough, force >= 2 grid steps so the "parallel" grid axis can shard
    # across v7x's two TensorCores (no-op on single-TC v5e/v6e).
    tm = max(8, min(_round_up(tm, 8), _round_up(N, 8)))
    if N > 16 and pl.cdiv(N, tm) < 2:
        tm = max(8, _round_up(pl.cdiv(N, 2), 8))
    grid = (pl.cdiv(N, tm),)

    # Small O(H^2) / O(H) prep fused into the jitted graph (traced once per shape).
    w1 = w1.astype(compute_dtype)
    w2 = w2.astype(compute_dtype)
    b1 = b1.reshape(1, H).astype(jnp.float32)
    b2 = b2.reshape(1, H).astype(jnp.float32)

    w_b = jnp.dtype(compute_dtype).itemsize
    x_b = jnp.dtype(x.dtype).itemsize
    vmem_est = (4 * H * H * w_b            # two resident weights, double-buffered
                + 4 * H * 4                # biases (f32), double-buffered
                + 2 * tm * H * x_b         # x tile, double-buffered
                + 2 * tm * H * x_b         # out tile, double-buffered
                + 4 * tm * H * 4)          # f32 intermediates headroom
    # Cap well below v7x's 64 MiB/TC physical VMEM (compiler scratch headroom).
    vmem_limit = int(min(48 * 1024 * 1024, max(32 * 1024 * 1024, 2 * vmem_est)))

    cost = pl.CostEstimate(
        flops=4 * N * H * H,                              # two (tm,H)x(H,H) matmuls
        transcendentals=2 * N * H,                        # one tanh per swish
        bytes_accessed=(2 * N * H * x_b                   # x in + out
                        + 2 * H * H * w_b                 # weights
                        + 2 * H * 4))                     # biases

    return pl.pallas_call(
        residual_layer_kernel,
        out_shape=jax.ShapeDtypeStruct((N, H), x.dtype),
        grid_spec=pltpu.PrefetchScalarGridSpec(
            num_scalar_prefetch=0,
            grid=grid,
            in_specs=[
                pl.BlockSpec((tm, H), lambda i: (i, 0)),   # x row tile
                pl.BlockSpec((H, H), lambda i: (0, 0)),    # W1 (constant index -> resident)
                pl.BlockSpec((1, H), lambda i: (0, 0)),    # b1
                pl.BlockSpec((H, H), lambda i: (0, 0)),    # W2
                pl.BlockSpec((1, H), lambda i: (0, 0)),    # b2
            ],
            out_specs=pl.BlockSpec((tm, H), lambda i: (i, 0)),
        ),
        compiler_params=pltpu.CompilerParams(
            dimension_semantics=("parallel",),
            vmem_limit_bytes=vmem_limit),
        cost_estimate=cost,
    )(x, w1, b1, w2, b2)


def reference(x, w1, b1, w2, b2):
    hp = jax.lax.Precision.HIGHEST

    def swish(z):
        return z * jax.nn.sigmoid(z)

    h = swish(jnp.dot(x, w1, precision=hp) + b1)
    return x + swish(jnp.dot(h, w2, precision=hp) + b2)


if __name__ == "__main__":
    key = jax.random.PRNGKey(0)

    def make_case(k, N, H):
        kx, kw1, kb1, kw2, kb2 = jax.random.split(k, 5)
        bound = 1.0 / (H ** 0.5)                 # matches nn.Linear default init scale
        x = jax.random.normal(kx, (N, H), jnp.float32)
        # Weights stored as (in, out) = W.T of the PyTorch (out, in) layout.
        w1 = jax.random.uniform(kw1, (H, H), jnp.float32, -bound, bound)
        b1 = jax.random.uniform(kb1, (H,), jnp.float32, -bound, bound)
        w2 = jax.random.uniform(kw2, (H, H), jnp.float32, -bound, bound)
        b2 = jax.random.uniform(kb2, (H,), jnp.float32, -bound, bound)
        return x, w1, b1, w2, b2

    k0, k1 = jax.random.split(key)

    # Case 1: module-spec small shape, seq=8, hidden_channels=32.
    # Native width H < 128: no padding anywhere (masked lane stores).
    args = make_case(k0, 8, 32)
    ref = reference(*args)
    out_f32 = jax.block_until_ready(
        residual_layer(*args, compute_dtype=jnp.float32))
    assert out_f32.shape == (8, 32)
    assert jnp.allclose(out_f32, ref, atol=1e-4, rtol=1e-4), "f32 mismatch (8,32)"
    out_bf16 = jax.block_until_ready(residual_layer(*args))
    assert out_bf16.shape == (8, 32)
    assert jnp.allclose(out_bf16, ref, atol=4e-2, rtol=4e-2), "bf16 mismatch (8,32)"

    # Case 2: lane-dense hidden (H=128) with a row count that does not divide
    # the tile: exercises the multi-step grid and the masked trailing block.
    args = make_case(k1, 300, 128)
    ref = reference(*args)
    out_f32 = jax.block_until_ready(
        residual_layer(*args, tm=128, compute_dtype=jnp.float32))
    assert out_f32.shape == (300, 128)
    assert jnp.allclose(out_f32, ref, atol=2e-3, rtol=2e-3), "f32 mismatch (300,128)"
    out_bf16 = jax.block_until_ready(residual_layer(*args, tm=128))
    assert out_bf16.shape == (300, 128)
    assert jnp.allclose(out_bf16, ref, atol=5e-2, rtol=5e-2), "bf16 mismatch (300,128)"

    print("KERNEL_OK")
</pallas_src>

<mosaic_0001>
module attributes {stable_mosaic.version = 11 : i64} {
  func.func @residual_layer_kernel(%arg0: i32, %arg1: memref<8x32xf32, #tpu.memory_space<vmem>>, %arg2: memref<32x32xf32, #tpu.memory_space<vmem>>, %arg3: memref<1x32xf32, #tpu.memory_space<vmem>>, %arg4: memref<32x32xf32, #tpu.memory_space<vmem>>, %arg5: memref<1x32xf32, #tpu.memory_space<vmem>>, %arg6: memref<8x32xf32, #tpu.memory_space<vmem>>) attributes {dimension_semantics = [#tpu.dimension_semantics<parallel>], iteration_bounds = array<i64: 1>, scalar_prefetch = 0 : i64, scratch_operands = 0 : i64, tpu.core_type = #tpu.core_type<tc>, window_params = [{transform_indices = @transform_0, window_bounds = array<i64: 8, 32>}, {pipeline_mode = #tpu.pipeline_mode<synchronous>, transform_indices = @transform_1, window_bounds = array<i64: 32, 32>}, {pipeline_mode = #tpu.pipeline_mode<synchronous>, transform_indices = @transform_2, window_bounds = array<i64: 1, 32>}, {pipeline_mode = #tpu.pipeline_mode<synchronous>, transform_indices = @transform_3, window_bounds = array<i64: 32, 32>}, {pipeline_mode = #tpu.pipeline_mode<synchronous>, transform_indices = @transform_4, window_bounds = array<i64: 1, 32>}, {transform_indices = @transform_5, window_bounds = array<i64: 8, 32>}]} {
    %c0 = arith.constant 0 : index
    %c0_0 = arith.constant 0 : index
    %0 = vector.load %arg1[%c0, %c0_0] : memref<8x32xf32, #tpu.memory_space<vmem>>, vector<8x32xf32>
    %c0_1 = arith.constant 0 : index
    %c0_2 = arith.constant 0 : index
    %1 = vector.load %arg2[%c0_1, %c0_2] : memref<32x32xf32, #tpu.memory_space<vmem>>, vector<32x32xf32>
    %cst = arith.constant dense<0.000000e+00> : vector<8x32xf32>
    %2 = tpu.matmul %0, %1, %cst {dimension_numbers = #tpu.dot_dimension_numbers<[1], [0], [0], [1], [0, 0, 1, 1], [], []>} : vector<8x32xf32>, vector<32x32xf32>, vector<8x32xf32> -> vector<8x32xf32>
    %c0_3 = arith.constant 0 : index
    %c0_4 = arith.constant 0 : index
    %3 = vector.load %arg3[%c0_3, %c0_4] : memref<1x32xf32, #tpu.memory_space<vmem>>, vector<1x32xf32>
    %4 = vector.broadcast %3 : vector<1x32xf32> to vector<8x32xf32>
    %5 = arith.addf %2, %4 : vector<8x32xf32>
    %cst_5 = arith.constant 5.000000e-01 : f32
    %6 = vector.broadcast %cst_5 : f32 to vector<8x32xf32>
    %7 = arith.mulf %6, %5 : vector<8x32xf32>
    %cst_6 = arith.constant 5.000000e-01 : f32
    %8 = vector.broadcast %cst_6 : f32 to vector<8x32xf32>
    %9 = arith.mulf %8, %5 : vector<8x32xf32>
    %10 = math.tanh %9 : vector<8x32xf32>
    %cst_7 = arith.constant 1.000000e+00 : f32
    %11 = vector.broadcast %cst_7 : f32 to vector<8x32xf32>
    %12 = arith.addf %11, %10 : vector<8x32xf32>
    %13 = arith.mulf %7, %12 : vector<8x32xf32>
    %c0_8 = arith.constant 0 : index
    %c0_9 = arith.constant 0 : index
    %14 = vector.load %arg4[%c0_8, %c0_9] : memref<32x32xf32, #tpu.memory_space<vmem>>, vector<32x32xf32>
    %cst_10 = arith.constant dense<0.000000e+00> : vector<8x32xf32>
    %15 = tpu.matmul %13, %14, %cst_10 {dimension_numbers = #tpu.dot_dimension_numbers<[1], [0], [0], [1], [0, 0, 1, 1], [], []>} : vector<8x32xf32>, vector<32x32xf32>, vector<8x32xf32> -> vector<8x32xf32>
    %c0_11 = arith.constant 0 : index
    %c0_12 = arith.constant 0 : index
    %16 = vector.load %arg5[%c0_11, %c0_12] : memref<1x32xf32, #tpu.memory_space<vmem>>, vector<1x32xf32>
    %17 = vector.broadcast %16 : vector<1x32xf32> to vector<8x32xf32>
    %18 = arith.addf %15, %17 : vector<8x32xf32>
    %cst_13 = arith.constant 5.000000e-01 : f32
    %19 = vector.broadcast %cst_13 : f32 to vector<8x32xf32>
    %20 = arith.mulf %19, %18 : vector<8x32xf32>
    %cst_14 = arith.constant 5.000000e-01 : f32
    %21 = vector.broadcast %cst_14 : f32 to vector<8x32xf32>
    %22 = arith.mulf %21, %18 : vector<8x32xf32>
    %23 = math.tanh %22 : vector<8x32xf32>
    %cst_15 = arith.constant 1.000000e+00 : f32
    %24 = vector.broadcast %cst_15 : f32 to vector<8x32xf32>
    %25 = arith.addf %24, %23 : vector<8x32xf32>
    %26 = arith.mulf %20, %25 : vector<8x32xf32>
    %c0_16 = arith.constant 0 : index
    %c0_17 = arith.constant 0 : index
    %27 = vector.load %arg1[%c0_16, %c0_17] : memref<8x32xf32, #tpu.memory_space<vmem>>, vector<8x32xf32>
    %28 = arith.addf %27, %26 : vector<8x32xf32>
    %c0_18 = arith.constant 0 : index
    %c0_19 = arith.constant 0 : index
    %29 = vector.load %arg6[%c0_18, %c0_19] : memref<8x32xf32, #tpu.memory_space<vmem>>, vector<8x32xf32>
    tpu.vector_store %arg6[%c0_18, %c0_19], %28 {strides = array<i32>} : memref<8x32xf32, #tpu.memory_space<vmem>>, vector<8x32xf32>,
    return
  }
  func.func @transform_0(%arg0: i32) -> (i32, i32) {
    %c0_i32 = arith.constant 0 : i32
    %c0_i32_0 = arith.constant 0 : i32
    return %arg0, %c0_i32 : i32, i32
  }
  func.func @transform_1(%arg0: i32) -> (i32, i32) {
    %c0_i32 = arith.constant 0 : i32
    %c0_i32_0 = arith.constant 0 : i32
    %c0_i32_1 = arith.constant 0 : i32
    return %c0_i32, %c0_i32_0 : i32, i32
  }
  func.func @transform_2(%arg0: i32) -> (i32, i32) {
    %c0_i32 = arith.constant 0 : i32
    %c0_i32_0 = arith.constant 0 : i32
    %c0_i32_1 = arith.constant 0 : i32
    return %c0_i32, %c0_i32_0 : i32, i32
  }
  func.func @transform_3(%arg0: i32) -> (i32, i32) {
    %c0_i32 = arith.constant 0 : i32
    %c0_i32_0 = arith.constant 0 : i32
    %c0_i32_1 = arith.constant 0 : i32
    return %c0_i32, %c0_i32_0 : i32, i32
  }
  func.func @transform_4(%arg0: i32) -> (i32, i32) {
    %c0_i32 = arith.constant 0 : i32
    %c0_i32_0 = arith.constant 0 : i32
    %c0_i32_1 = arith.constant 0 : i32
    return %c0_i32, %c0_i32_0 : i32, i32
  }
  func.func @transform_5(%arg0: i32) -> (i32, i32) {
    %c0_i32 = arith.constant 0 : i32
    %c0_i32_0 = arith.constant 0 : i32
    return %arg0, %c0_i32 : i32, i32
  }
}

</mosaic_0001>

<llo_original>
// kernel: residual_layer.1
$region0: #{residual_layer.1}
  #allocation0 [shape = 'u32[]', space=smem, size = 0x4, offset = 0x4, fixed_abs, tag = 'smem constant byte address 0x4 - core index']
  #allocation1 [shape = 'u32[144,128]{1,0:T(1,128)}', space=vmem, size = 0x12000, scoped, tag = 'internal scratch']
  %s0 = inlined_call_operand.hbm [shape: f32[8,32], index: 0, kind: input, shape index: {}]
  %s1 = inlined_call_operand.hbm [shape: f32[32,32], index: 1, kind: input, shape index: {}]
  %s2 = inlined_call_operand.vmem [shape: f32[1,32], index: 2, kind: input, shape index: {}]
  %s3 = inlined_call_operand.hbm [shape: f32[32,32], index: 3, kind: input, shape index: {}]
  %s4 = inlined_call_operand.vmem [shape: f32[1,32], index: 4, kind: input, shape index: {}]
  %s5 = inlined_call_operand.hbm [shape: f32[8,32], index: 5, kind: output, shape index: {}]
  %s6 = sld [smem:[#allocation0]]
  $region42: #{residual_layer.1} parent=0
    _
  %s8 = ssub.s32 1, %s6
  %s9 = scalar_select 0, %s8, %s6
  $region1: #{residual_layer.1} parent=0
    #allocation2 [shape = 'u8[4096]{0}', space=vmem, size = 0x1000, scoped, tag = 'input window, operand 0, single buffered']
    #allocation3 [shape = 's32[1]{0}', space=sflag, size = 0x4, scoped, tag = 'scoped memory for residual_layer.1']
    #allocation4 [shape = 's32[1]{0}', space=sflag, size = 0x4, scoped, tag = 'scoped memory for residual_layer.1']
    #allocation5 [shape = 'u8[16384]{0}', space=vmem, size = 0x4000, scoped, tag = 'input window, operand 1, single buffered']
    #allocation6 [shape = 's32[1]{0}', space=sflag, size = 0x4, scoped, tag = 'scoped memory for residual_layer.1']
    #allocation7 [shape = 'u8[16384]{0}', space=vmem, size = 0x4000, scoped, tag = 'input window, operand 3, single buffered']
    #allocation8 [shape = 'u8[4096]{0}', space=vmem, size = 0x1000, scoped, tag = 'output window, operand 0, single buffered']
    %10 = vsyncpa [#allocation3], 0
    %11 = vsyncpa [#allocation6], 0
    %12 = vsyncpa [#allocation4], 0
    // Predicated region
    $region2: #{residual_layer.1} parent=1 // pred_check
      _
    $region3: #{residual_layer.1} parent=1 // pred_check_branch
      %14 = sbr.rel (0) target = $region5
    $region4: #{residual_layer.1} parent=1 // pred_region
      %s16 = ssub.s32 128, 128
      %17 = vsyncadd [#allocation3], %s16
      %s19 = sshll.u32 [#allocation2], 4
      %s20 = int_to_ptr.vmem [resolvable:$true] %s19
      %22 = dma.hbm_to_vmem [thread:$0]  %s0, 128, %s20, [#allocation3]
    $region5: #{residual_layer.1} parent=1 // pred_fallthru
      _
    // Predicated region
    $region6: #{residual_layer.1} parent=1 // pred_check
      _
    $region7: #{residual_layer.1} parent=1 // pred_check_branch
      %24 = sbr.rel (0) target = $region9
    $region8: #{residual_layer.1} parent=1 // pred_region
      %s26 = ssub.s32 512, 512
      %27 = vsyncadd [#allocation6], %s26
      %s28 = sshll.u32 [#allocation5], 4
      %s29 = int_to_ptr.vmem [resolvable:$true] %s28
      %34 = dma.hbm_to_vmem [thread:$0]  %s1, 512, %s29, [#allocation6], 128, 128, 8
    $region9: #{residual_layer.1} parent=1 // pred_fallthru
      _
    // Predicated region
    $region10: #{residual_layer.1} parent=1 // pred_check
      _
    $region11: #{residual_layer.1} parent=1 // pred_check_branch
      %36 = sbr.rel (0) target = $region13
    $region12: #{residual_layer.1} parent=1 // pred_region
      _
    $region13: #{residual_layer.1} parent=1 // pred_fallthru
      _
    // Predicated region
    $region14: #{residual_layer.1} parent=1 // pred_check
      _
    $region15: #{residual_layer.1} parent=1 // pred_check_branch
      %38 = sbr.rel (0) target = $region17
    $region16: #{residual_layer.1} parent=1 // pred_region
      %s40 = ssub.s32 512, 512
      %41 = vsyncadd [#allocation6], %s40
      %s42 = sshll.u32 [#allocation7], 4
      %s43 = int_to_ptr.vmem [resolvable:$true] %s42
      %48 = dma.hbm_to_vmem [thread:$0]  %s3, 512, %s43, [#allocation6], 128, 128, 8
    $region17: #{residual_layer.1} parent=1 // pred_fallthru
      _
    // Predicated region
    $region18: #{residual_layer.1} parent=1 // pred_check
      _
    $region19: #{residual_layer.1} parent=1 // pred_check_branch
      %50 = sbr.rel (0) target = $region21
    $region20: #{residual_layer.1} parent=1 // pred_region
      _
    $region21: #{residual_layer.1} parent=1 // pred_fallthru
      _
    // Predicated region
    $region22: #{residual_layer.1} parent=1 // pred_check
      _
    $region23: #{residual_layer.1} parent=1 // pred_check_branch
      %52 = sbr.rel (0) target = $region25
    $region24: #{residual_layer.1} parent=1 // pred_region
      %53 = dma.done [#allocation3], 128
    $region25: #{residual_layer.1} parent=1 // pred_fallthru
      _
    // Predicated region
    $region26: #{residual_layer.1} parent=1 // pred_check
      _
    $region27: #{residual_layer.1} parent=1 // pred_check_branch
      %55 = sbr.rel (0) target = $region29
    $region28: #{residual_layer.1} parent=1 // pred_region
      %56 = dma.done [#allocation6], 512
    $region29: #{residual_layer.1} parent=1 // pred_fallthru
      _
    // Predicated region
    $region30: #{residual_layer.1} parent=1 // pred_check
      _
    $region31: #{residual_layer.1} parent=1 // pred_check_branch
      %58 = sbr.rel (0) target = $region33
    $region32: #{residual_layer.1} parent=1 // pred_region
      %59 = dma.done [#allocation6], 512
    $region33: #{residual_layer.1} parent=1 // pred_fallthru
      _
    %v60 = vld [vmem:[#allocation2] sm:$0xff]
    %v61 = vld [vmem:[#allocation5] sm:$0xff]
    %v62 = vld [vmem:[#allocation5 + $0x8] sm:$0xff]
    %v63 = vld [vmem:[#allocation5 + $0x10] sm:$0xff]
    %v64 = vld [vmem:[#allocation5 + $0x18] sm:$0xff]
    %v65 = vld [vmem:[%s2] sm:$0x1]
    %v67 = vlaneseq
    %v68 = vshrl.u32 %v67, 7
    %v69 = vsub.s32 0, %v68
    %v70 = vrot.slane %v65, %v69
    %vm72 = vcmask 261120
    %v74 = vsel %vm72, %v60, 0
    %76 = vmatprep.subr.mxu0 0.0
    %77 = vmatpush1.msra.mxu0 %v61
    %78 = vmatprep.subr.mxu0 0.0
    %79 = vmatpush1.msra.mxu0 %v62
    %80 = vmatprep.subr.mxu0 0.0
    %81 = vmatpush1.msra.mxu0 %v63
    %82 = vmatprep.subr.mxu0 0.0
    %83 = vmatpush1.msra.mxu0 %v64
    %84 = vmatprep.subr.mxu0 0.0
    %85 = vmatpush1.msra.mxu0 0.0
    %86 = vmatprep.subr.mxu0 0.0
    %87 = vmatpush1.msra.mxu0 0.0
    %88 = vmatprep.subr.mxu0 0.0
    %89 = vmatpush1.msra.mxu0 0.0
    %90 = vmatprep.subr.mxu0 0.0
    %91 = vmatpush1.msra.mxu0 0.0
    %92 = vmatprep.subr.mxu0 0.0
    %93 = vmatpush1.msra.mxu0 0.0
    %94 = vmatprep.subr.mxu0 0.0
    %95 = vmatpush1.msra.mxu0 0.0
    %96 = vmatprep.subr.mxu0 0.0
    %97 = vmatpush1.msra.mxu0 0.0
    %98 = vmatprep.subr.mxu0 0.0
    %99 = vmatpush1.msra.mxu0 0.0
    %100 = vmatprep.subr.mxu0 0.0
    %101 = vmatpush1.msra.mxu0 0.0
    %102 = vmatprep.subr.mxu0 0.0
    %103 = vmatpush1.msra.mxu0 0.0
    %104 = vmatprep.subr.mxu0 0.0
    %105 = vmatpush1.msra.mxu0 0.0
    %106 = vmatprep.subr.mxu0 0.0
    %107 = vmatpush1.msra.mxu0 0.0
    %108 = vmatprep.subr.mxu0 0.0
    %109 = vmatpush1.msra.mxu0 0.0
    %110 = vmatprep.subr.mxu0 0.0
    %111 = vmatpush1.msra.mxu0 0.0
    %112 = vmatprep.subr.mxu0 0.0
    %113 = vmatpush1.msra.mxu0 0.0
    %114 = vmatprep.subr.mxu0 0.0
    %115 = vmatpush1.msra.mxu0 0.0
    %116 = vmatprep.subr.mxu0 0.0
    %117 = vmatpush1.msra.mxu0 0.0
    %118 = vmatprep.subr.mxu0 0.0
    %119 = vmatpush1.msra.mxu0 0.0
    %120 = vmatprep.subr.mxu0 0.0
    %121 = vmatpush1.msra.mxu0 0.0
    %122 = vmatprep.subr.mxu0 0.0
    %123 = vmatpush1.msra.mxu0 0.0
    %124 = vmatprep.subr.mxu0 0.0
    %125 = vmatpush1.msra.mxu0 0.0
    %126 = vmatprep.subr.mxu0 0.0
    %127 = vmatpush1.msra.mxu0 0.0
    %128 = vmatprep.subr.mxu0 0.0
    %129 = vmatpush1.msra.mxu0 0.0
    %130 = vmatprep.subr.mxu0 0.0
    %131 = vmatpush1.msra.mxu0 0.0
    %132 = vmatprep.subr.mxu0 0.0
    %133 = vmatpush1.msra.mxu0 0.0
    %134 = vmatprep.subr.mxu0 0.0
    %135 = vmatpush1.msra.mxu0 0.0
    %136 = vmatprep.subr.mxu0 0.0
    %137 = vmatpush1.msra.mxu0 0.0
    %138 = vmatprep.subr.mxu0 0.0
    %139 = vmatpush1.msra.mxu0 0.0
    %140 = vmatprep.mubr.f32.mxu0 0.0
    %141 = vmatmul.mubr.f32.gmra.mrb[0].mxu0 %v74
    %v142 = vpop.f32.mrb[0].mxu0
    %v143 = vadd.f32 %v70, %v142
    %v144 = vpop.f32.mrb[0].mxu0
    %145 = vdwg.mxu0
    %v146 = vmul.f32 %v143, 0.5
    %v147 = vtanh.pop %v146
    %v148 = vadd.f32 %v147, 1.0
    %v149 = vmul.f32 %v146, %v148
    %v150 = vld [vmem:[#allocation7] sm:$0xff]
    %v151 = vld [vmem:[#allocation7 + $0x8] sm:$0xff]
    %v152 = vld [vmem:[#allocation7 + $0x10] sm:$0xff]
    %v153 = vld [vmem:[#allocation7 + $0x18] sm:$0xff]
    %v154 = vld [vmem:[%s4] sm:$0x1]
    %v156 = vlaneseq
    %v157 = vshrl.u32 %v156, 7
    %v158 = vsub.s32 0, %v157
    %v159 = vrot.slane %v154, %v158
    %v162 = vsel %vm72, %v149, 0
    %164 = vmatprep.subr.mxu0 0.0
    %165 = vmatpush1.msra.mxu0 %v150
    %166 = vmatprep.subr.mxu0 0.0
    %167 = vmatpush1.msra.mxu0 %v151
    %168 = vmatprep.subr.mxu0 0.0
    %169 = vmatpush1.msra.mxu0 %v152
    %170 = vmatprep.subr.mxu0 0.0
    %171 = vmatpush1.msra.mxu0 %v153
    %172 = vmatprep.subr.mxu0 0.0
    %173 = vmatpush1.msra.mxu0 0.0
    %174 = vmatprep.subr.mxu0 0.0
    %175 = vmatpush1.msra.mxu0 0.0
    %176 = vmatprep.subr.mxu0 0.0
    %177 = vmatpush1.msra.mxu0 0.0
    %178 = vmatprep.subr.mxu0 0.0
    %179 = vmatpush1.msra.mxu0 0.0
    %180 = vmatprep.subr.mxu0 0.0
    %181 = vmatpush1.msra.mxu0 0.0
    %182 = vmatprep.subr.mxu0 0.0
    %183 = vmatpush1.msra.mxu0 0.0
    %184 = vmatprep.subr.mxu0 0.0
    %185 = vmatpush1.msra.mxu0 0.0
    %186 = vmatprep.subr.mxu0 0.0
    %187 = vmatpush1.msra.mxu0 0.0
    %188 = vmatprep.subr.mxu0 0.0
    %189 = vmatpush1.msra.mxu0 0.0
    %190 = vmatprep.subr.mxu0 0.0
    %191 = vmatpush1.msra.mxu0 0.0
    %192 = vmatprep.subr.mxu0 0.0
    %193 = vmatpush1.msra.mxu0 0.0
    %194 = vmatprep.subr.mxu0 0.0
    %195 = vmatpush1.msra.mxu0 0.0
    %196 = vmatprep.subr.mxu0 0.0
    %197 = vmatpush1.msra.mxu0 0.0
    %198 = vmatprep.subr.mxu0 0.0
    %199 = vmatpush1.msra.mxu0 0.0
    %200 = vmatprep.subr.mxu0 0.0
    %201 = vmatpush1.msra.mxu0 0.0
    %202 = vmatprep.subr.mxu0 0.0
    %203 = vmatpush1.msra.mxu0 0.0
    %204 = vmatprep.subr.mxu0 0.0
    %205 = vmatpush1.msra.mxu0 0.0
    %206 = vmatprep.subr.mxu0 0.0
    %207 = vmatpush1.msra.mxu0 0.0
    %208 = vmatprep.subr.mxu0 0.0
    %209 = vmatpush1.msra.mxu0 0.0
    %210 = vmatprep.subr.mxu0 0.0
    %211 = vmatpush1.msra.mxu0 0.0
    %212 = vmatprep.subr.mxu0 0.0
    %213 = vmatpush1.msra.mxu0 0.0
    %214 = vmatprep.subr.mxu0 0.0
    %215 = vmatpush1.msra.mxu0 0.0
    %216 = vmatprep.subr.mxu0 0.0
    %217 = vmatpush1.msra.mxu0 0.0
    %218 = vmatprep.subr.mxu0 0.0
    %219 = vmatpush1.msra.mxu0 0.0
    %220 = vmatprep.subr.mxu0 0.0
    %221 = vmatpush1.msra.mxu0 0.0
    %222 = vmatprep.subr.mxu0 0.0
    %223 = vmatpush1.msra.mxu0 0.0
    %224 = vmatprep.subr.mxu0 0.0
    %225 = vmatpush1.msra.mxu0 0.0
    %226 = vmatprep.subr.mxu0 0.0
    %227 = vmatpush1.msra.mxu0 0.0
    %228 = vmatprep.mubr.f32.mxu0 0.0
    %229 = vmatmul.mubr.f32.gmra.mrb[0].mxu0 %v162
    %v230 = vpop.f32.mrb[0].mxu0
    %v231 = vadd.f32 %v159, %v230
    %v232 = vpop.f32.mrb[0].mxu0
    %233 = vdwg.mxu0
    %v234 = vmul.f32 %v231, 0.5
    %v235 = vtanh.pop %v234
    %v236 = vadd.f32 %v235, 1.0
    %v237 = vmul.f32 %v234, %v236
    %v238 = vadd.f32 %v60, %v237
    %239 = vst.msk [vmem:[#allocation8] sm:$0xff] %vm72, %v238
    // Predicated region
    $region34: #{residual_layer.1} parent=1 // pred_check
      _
    $region35: #{residual_layer.1} parent=1 // pred_check_branch
      %241 = sbr.rel (0) target = $region37
    $region36: #{residual_layer.1} parent=1 // pred_region
      %s243 = ssub.s32 128, 128
      %244 = vsyncadd [#allocation4], %s243
      %s246 = sshll.u32 [#allocation8], 4
      %s247 = int_to_ptr.vmem [resolvable:$true] %s246
      %249 = dma.vmem_to_hbm [thread:$0]  %s247, 128, %s5, [#allocation4]
    $region37: #{residual_layer.1} parent=1 // pred_fallthru
      _
    // Predicated region
    $region38: #{residual_layer.1} parent=1 // pred_check
      _
    $region39: #{residual_layer.1} parent=1 // pred_check_branch
      %251 = sbr.rel (0) target = $region41
    $region40: #{residual_layer.1} parent=1 // pred_region
      %252 = dma.done [#allocation4], 128
    $region41: #{residual_layer.1} parent=1 // pred_fallthru
      _
    %253 = vsyncpa [#allocation3], 1
    %254 = vsyncpa [#allocation6], 1
    %255 = vsyncpa [#allocation4], 1

</llo_original>
